<compile_context>
chip_gen: v7x
topology: tpu7x:2x2x1
jax: 0.10.0
libtpu: 0.0.40
codegen_flags: <defaults>
</compile_context>

<pallas_src>
import jax
import jax.numpy as jnp
from jax.experimental import pallas as pl
from jax.experimental.pallas import tpu as pltpu

M, K, N = 3, 4, 5  # shapes fixed by the module: mat2 (4,5), bias (3,5) -> input (3,4)


def _addmm_kernel(x_ref, w_ref, b_ref, o_ref):
    # Tiny GEMM entirely on the VPU:
    #   acc = bias; acc += x[:, k] * w[k, :] for k in 0..K-1 (static unroll).
    x = x_ref[...]    # (M, K) f32
    w = w_ref[...]    # (K, N) f32
    acc = b_ref[...]  # (M, N) f32 — seed with bias (beta = 1.0, alpha = 1.0)
    for k in range(K):  # K = 4 → a handful of VPU fmul/fadd bundles
        acc = acc + x[:, k:k + 1] * w[k:k + 1, :]
    o_ref[...] = acc.astype(o_ref.dtype)


def addmm_pallas(x, mat2, bias):
    assert x.shape == (M, K)
    assert mat2.shape == (K, N)
    assert bias.shape == (M, N)
    vmem_spec = pl.BlockSpec(memory_space=pltpu.MemorySpace.VMEM)
    return pl.pallas_call(
        _addmm_kernel,
        out_shape=jax.ShapeDtypeStruct((M, N), jnp.float32),
        in_specs=[vmem_spec, vmem_spec, vmem_spec],
        out_specs=vmem_spec,
    )(x, mat2, bias)


if __name__ == "__main__":
    key = jax.random.PRNGKey(0)
    k_x, k_w, k_b = jax.random.split(key, 3)

    # Deterministic "parameters" (module's torch.randn equivalents) and input.
    x = jax.random.normal(k_x, (M, K), dtype=jnp.float32)      # input (3, 4)
    mat2 = jax.random.normal(k_w, (K, N), dtype=jnp.float32)   # self.mat2 (4, 5)
    bias = jax.random.normal(k_b, (M, N), dtype=jnp.float32)   # self.bias (3, 5)

    out = addmm_pallas(x, mat2, bias)
    jax.block_until_ready(out)

    # Sanity check against plain JAX reference.
    ref = x @ mat2 + bias
    assert out.shape == (M, N)
    assert jnp.allclose(out, ref, atol=1e-5, rtol=1e-5)

    print("KERNEL_OK")
</pallas_src>

<mosaic_0001>
module attributes {stable_mosaic.version = 11 : i64} {
  func.func @_addmm_kernel(%arg0: memref<3x4xf32, #tpu.memory_space<vmem>>, %arg1: memref<4x5xf32, #tpu.memory_space<vmem>>, %arg2: memref<3x5xf32, #tpu.memory_space<vmem>>, %arg3: memref<3x5xf32, #tpu.memory_space<vmem>>) attributes {dimension_semantics = [], scalar_prefetch = 0 : i64, scratch_operands = 0 : i64, tpu.core_type = #tpu.core_type<tc>} {
    %c0 = arith.constant 0 : index
    %c0_0 = arith.constant 0 : index
    %0 = vector.load %arg0[%c0, %c0_0] : memref<3x4xf32, #tpu.memory_space<vmem>>, vector<3x4xf32>
    %c0_1 = arith.constant 0 : index
    %c0_2 = arith.constant 0 : index
    %1 = vector.load %arg1[%c0_1, %c0_2] : memref<4x5xf32, #tpu.memory_space<vmem>>, vector<4x5xf32>
    %c0_3 = arith.constant 0 : index
    %c0_4 = arith.constant 0 : index
    %2 = vector.load %arg2[%c0_3, %c0_4] : memref<3x5xf32, #tpu.memory_space<vmem>>, vector<3x5xf32>
    %3 = vector.extract_strided_slice %0 {offsets = [0, 0], sizes = [3, 1], strides = [1, 1]} : vector<3x4xf32> to vector<3x1xf32>
    %4 = vector.extract_strided_slice %1 {offsets = [0, 0], sizes = [1, 5], strides = [1, 1]} : vector<4x5xf32> to vector<1x5xf32>
    %5 = vector.broadcast %3 : vector<3x1xf32> to vector<3x5xf32>
    %6 = vector.broadcast %4 : vector<1x5xf32> to vector<3x5xf32>
    %7 = arith.mulf %5, %6 : vector<3x5xf32>
    %8 = arith.addf %2, %7 : vector<3x5xf32>
    %9 = vector.extract_strided_slice %0 {offsets = [0, 1], sizes = [3, 1], strides = [1, 1]} : vector<3x4xf32> to vector<3x1xf32>
    %10 = vector.extract_strided_slice %1 {offsets = [1, 0], sizes = [1, 5], strides = [1, 1]} : vector<4x5xf32> to vector<1x5xf32>
    %11 = vector.broadcast %9 : vector<3x1xf32> to vector<3x5xf32>
    %12 = vector.broadcast %10 : vector<1x5xf32> to vector<3x5xf32>
    %13 = arith.mulf %11, %12 : vector<3x5xf32>
    %14 = arith.addf %8, %13 : vector<3x5xf32>
    %15 = vector.extract_strided_slice %0 {offsets = [0, 2], sizes = [3, 1], strides = [1, 1]} : vector<3x4xf32> to vector<3x1xf32>
    %16 = vector.extract_strided_slice %1 {offsets = [2, 0], sizes = [1, 5], strides = [1, 1]} : vector<4x5xf32> to vector<1x5xf32>
    %17 = vector.broadcast %15 : vector<3x1xf32> to vector<3x5xf32>
    %18 = vector.broadcast %16 : vector<1x5xf32> to vector<3x5xf32>
    %19 = arith.mulf %17, %18 : vector<3x5xf32>
    %20 = arith.addf %14, %19 : vector<3x5xf32>
    %21 = vector.extract_strided_slice %0 {offsets = [0, 3], sizes = [3, 1], strides = [1, 1]} : vector<3x4xf32> to vector<3x1xf32>
    %22 = vector.extract_strided_slice %1 {offsets = [3, 0], sizes = [1, 5], strides = [1, 1]} : vector<4x5xf32> to vector<1x5xf32>
    %23 = vector.broadcast %21 : vector<3x1xf32> to vector<3x5xf32>
    %24 = vector.broadcast %22 : vector<1x5xf32> to vector<3x5xf32>
    %25 = arith.mulf %23, %24 : vector<3x5xf32>
    %26 = arith.addf %20, %25 : vector<3x5xf32>
    %c0_5 = arith.constant 0 : index
    %c0_6 = arith.constant 0 : index
    %27 = vector.load %arg3[%c0_5, %c0_6] : memref<3x5xf32, #tpu.memory_space<vmem>>, vector<3x5xf32>
    tpu.vector_store %arg3[%c0_5, %c0_6], %26 {strides = array<i32>} : memref<3x5xf32, #tpu.memory_space<vmem>>, vector<3x5xf32>,
    return
  }
}

</mosaic_0001>

<llo_original>
// kernel: tpu_custom_call.1
$region0: #{tpu_custom_call.1}
  #allocation0 [shape = 'u32[]', space=smem, size = 0x4, offset = 0x4, fixed_abs, tag = 'smem constant byte address 0x4 - core index']
  #allocation1 [shape = 'u32[144,128]{1,0:T(1,128)}', space=vmem, size = 0x12000, scoped, tag = 'internal scratch']
  %s0 = inlined_call_operand.hbm [shape: f32[3,4], index: 0, kind: input, shape index: {}]
  %s1 = inlined_call_operand.hbm [shape: f32[4,5], index: 1, kind: input, shape index: {}]
  %s2 = inlined_call_operand.vmem [shape: f32[3,5], index: 2, kind: input, shape index: {}]
  %s3 = inlined_call_operand.hbm [shape: f32[3,5], index: 3, kind: output, shape index: {}]
  %s4 = sld [smem:[#allocation0]]
  $region30: #{tpu_custom_call.1} parent=0
    _
  %s6 = ssub.s32 1, %s4
  %s7 = scalar_select 0, %s6, %s4
  $region1: #{tpu_custom_call.1} parent=0
    #allocation2 [shape = 'u8[2048]{0}', space=vmem, size = 0x800, scoped, tag = 'input window, operand 0, single buffered']
    #allocation3 [shape = 's32[1]{0}', space=sflag, size = 0x4, scoped, tag = 'scoped memory for tpu_custom_call.1']
    #allocation4 [shape = 's32[1]{0}', space=sflag, size = 0x4, scoped, tag = 'scoped memory for tpu_custom_call.1']
    #allocation5 [shape = 'u8[2048]{0}', space=vmem, size = 0x800, scoped, tag = 'input window, operand 1, single buffered']
    #allocation6 [shape = 's32[1]{0}', space=sflag, size = 0x4, scoped, tag = 'scoped memory for tpu_custom_call.1']
    #allocation7 [shape = 'u8[2048]{0}', space=vmem, size = 0x800, scoped, tag = 'output window, operand 0, single buffered']
    %8 = vsyncpa [#allocation3], 0
    %9 = vsyncpa [#allocation6], 0
    %10 = vsyncpa [#allocation4], 0
    // Predicated region
    $region2: #{tpu_custom_call.1} parent=1 // pred_check
      _
    $region3: #{tpu_custom_call.1} parent=1 // pred_check_branch
      %12 = sbr.rel (0) target = $region5
    $region4: #{tpu_custom_call.1} parent=1 // pred_region
      %s14 = ssub.s32 64, 64
      %15 = vsyncadd [#allocation3], %s14
      %s17 = sshll.u32 [#allocation2], 4
      %s18 = int_to_ptr.vmem [resolvable:$true] %s17
      %20 = dma.hbm_to_vmem [thread:$0]  %s0, 64, %s18, [#allocation3]
    $region5: #{tpu_custom_call.1} parent=1 // pred_fallthru
      _
    // Predicated region
    $region6: #{tpu_custom_call.1} parent=1 // pred_check
      _
    $region7: #{tpu_custom_call.1} parent=1 // pred_check_branch
      %22 = sbr.rel (0) target = $region9
    $region8: #{tpu_custom_call.1} parent=1 // pred_region
      %s24 = ssub.s32 64, 64
      %25 = vsyncadd [#allocation6], %s24
      %s27 = sshll.u32 [#allocation5], 4
      %s28 = int_to_ptr.vmem [resolvable:$true] %s27
      %30 = dma.hbm_to_vmem [thread:$0]  %s1, 64, %s28, [#allocation6]
    $region9: #{tpu_custom_call.1} parent=1 // pred_fallthru
      _
    // Predicated region
    $region10: #{tpu_custom_call.1} parent=1 // pred_check
      _
    $region11: #{tpu_custom_call.1} parent=1 // pred_check_branch
      %32 = sbr.rel (0) target = $region13
    $region12: #{tpu_custom_call.1} parent=1 // pred_region
      _
    $region13: #{tpu_custom_call.1} parent=1 // pred_fallthru
      _
    // Predicated region
    $region14: #{tpu_custom_call.1} parent=1 // pred_check
      _
    $region15: #{tpu_custom_call.1} parent=1 // pred_check_branch
      %34 = sbr.rel (0) target = $region17
    $region16: #{tpu_custom_call.1} parent=1 // pred_region
      %35 = dma.done [#allocation3], 64
    $region17: #{tpu_custom_call.1} parent=1 // pred_fallthru
      _
    // Predicated region
    $region18: #{tpu_custom_call.1} parent=1 // pred_check
      _
    $region19: #{tpu_custom_call.1} parent=1 // pred_check_branch
      %37 = sbr.rel (0) target = $region21
    $region20: #{tpu_custom_call.1} parent=1 // pred_region
      %38 = dma.done [#allocation6], 64
    $region21: #{tpu_custom_call.1} parent=1 // pred_fallthru
      _
    %v39 = vld [vmem:[#allocation2] sm:$0x7]
    %v40 = vld [vmem:[#allocation5] sm:$0xf]
    %v41 = vld [vmem:[%s2] sm:$0x7]
    %43 = vset.pattern.permute.xlu0 0
    %44 = vperm.xlu0 %43, %v39
    %v45 = vpop.permute.xlu0 %44
    %v47 = vlaneseq
    %v48 = vshrl.u32 %v47, 7
    %v49 = vsub.s32 0, %v48
    %v50 = vrot.slane %v40, %v49
    %v51 = vmul.f32 %v45, %v50
    %v52 = vadd.f32 %v41, %v51
    %53 = vset.pattern.permute.xlu0 1
    %54 = vperm.xlu0 %53, %v39
    %v55 = vpop.permute.xlu0 %54
    %v57 = vlaneseq
    %v58 = vshrl.u32 %v57, 7
    %v59 = vsub.s32 1, %v58
    %v60 = vrot.slane %v40, %v59
    %v61 = vmul.f32 %v55, %v60
    %v62 = vadd.f32 %v52, %v61
    %63 = vset.pattern.permute.xlu0 2
    %64 = vperm.xlu0 %63, %v39
    %v65 = vpop.permute.xlu0 %64
    %v67 = vlaneseq
    %v68 = vshrl.u32 %v67, 7
    %v69 = vsub.s32 2, %v68
    %v70 = vrot.slane %v40, %v69
    %v71 = vmul.f32 %v65, %v70
    %v72 = vadd.f32 %v62, %v71
    %73 = vset.pattern.permute.xlu0 3
    %74 = vperm.xlu0 %73, %v39
    %v75 = vpop.permute.xlu0 %74
    %v77 = vlaneseq
    %v78 = vshrl.u32 %v77, 7
    %v79 = vsub.s32 3, %v78
    %v80 = vrot.slane %v40, %v79
    %v81 = vmul.f32 %v75, %v80
    %v82 = vadd.f32 %v72, %v81
    %vm83 = vcmask 34816
    %84 = vst.msk [vmem:[#allocation7] sm:$0x7] %vm83, %v82
    // Predicated region
    $region22: #{tpu_custom_call.1} parent=1 // pred_check
      _
    $region23: #{tpu_custom_call.1} parent=1 // pred_check_branch
      %86 = sbr.rel (0) target = $region25
    $region24: #{tpu_custom_call.1} parent=1 // pred_region
      %s88 = ssub.s32 64, 64
      %89 = vsyncadd [#allocation4], %s88
      %s91 = sshll.u32 [#allocation7], 4
      %s92 = int_to_ptr.vmem [resolvable:$true] %s91
      %94 = dma.vmem_to_hbm [thread:$0]  %s92, 64, %s3, [#allocation4]
    $region25: #{tpu_custom_call.1} parent=1 // pred_fallthru
      _
    // Predicated region
    $region26: #{tpu_custom_call.1} parent=1 // pred_check
      _
    $region27: #{tpu_custom_call.1} parent=1 // pred_check_branch
      %96 = sbr.rel (0) target = $region29
    $region28: #{tpu_custom_call.1} parent=1 // pred_region
      %97 = dma.done [#allocation4], 64
    $region29: #{tpu_custom_call.1} parent=1 // pred_fallthru
      _
    %98 = vsyncpa [#allocation3], 1
    %99 = vsyncpa [#allocation6], 1
    %100 = vsyncpa [#allocation4], 1

</llo_original>
